<compile_context>
chip_gen: v6e
topology: v6e:2x2x1
jax: 0.10.0
libtpu: 0.0.40
codegen_flags: <defaults>
</compile_context>

<pallas_src>
import functools

import jax
import jax.numpy as jnp
from jax.experimental import pallas as pl
from jax.experimental.pallas import tpu as pltpu

NUM_CLASSES = 7
EPSILON = 0.1


def _ce_label_smooth_kernel(x_ref, lbl_ref, out_ref, *, num_classes, epsilon):
    """x_ref: (C, tile_n) f32 logits (class-major); lbl_ref: (1, tile_n) i32;
    out_ref: (1, tile_n) f32 per-row label-smoothed cross-entropy."""
    x = x_ref[...]                                        # (C, tile_n) f32
    lbl = lbl_ref[...]                                    # (1, tile_n) i32
    c, tn = x.shape

    # Per-row (per-lane) logsumexp over the class (sublane) axis.
    m = jnp.max(x, axis=0, keepdims=True)                 # (1, tile_n)
    lse = m + jnp.log(jnp.sum(jnp.exp(x - m), axis=0, keepdims=True))

    # sum_c x[n, c]
    s = jnp.sum(x, axis=0, keepdims=True)                 # (1, tile_n)

    # x[n, y_n] via one-hot on the sublane axis (iota == label), no gather needed.
    cls = jax.lax.broadcasted_iota(jnp.int32, (c, tn), 0)
    g = jnp.sum(jnp.where(cls == lbl, x, 0.0), axis=0, keepdims=True)

    # Per-row loss: lse - (1-eps) * x[y] - (eps/C) * sum_c x
    out_ref[...] = lse - (1.0 - epsilon) * g - (epsilon / num_classes) * s


def cross_entropy_label_smooth(inputs, targets, *, num_classes=NUM_CLASSES,
                               epsilon=EPSILON, tile_n=2048):
    """inputs: (N, num_classes) float logits; targets: (N,) int class ids -> scalar f32."""
    n, c = inputs.shape
    assert c == num_classes
    assert tile_n % 128 == 0, "row tile must be lane-aligned (multiple of 128)"

    # Pad the batch to a lane-aligned multiple of the row tile.
    n_ceil = pl.cdiv(n, 128) * 128
    tile_n = min(tile_n, n_ceil)
    n_pad = pl.cdiv(n_ceil, tile_n) * tile_n
    num_tiles = n_pad // tile_n

    # Class-major, lane-dense layout: (C, N_pad). One cheap XLA relayout pass that
    # buys dense vregs / dense DMA inside the kernel.
    x_t = jnp.pad(inputs.astype(jnp.float32).T, ((0, 0), (0, n_pad - n)))
    lbl = jnp.pad(targets.astype(jnp.int32).reshape(1, n), ((0, 0), (0, n_pad - n)))

    kernel = functools.partial(_ce_label_smooth_kernel,
                               num_classes=num_classes, epsilon=float(epsilon))

    row_losses = pl.pallas_call(
        kernel,
        out_shape=jax.ShapeDtypeStruct((1, n_pad), jnp.float32),
        grid_spec=pltpu.PrefetchScalarGridSpec(
            num_scalar_prefetch=0,
            grid=(num_tiles,),
            in_specs=[
                pl.BlockSpec((c, tile_n), lambda i: (0, i)),   # logits, class-major
                pl.BlockSpec((1, tile_n), lambda i: (0, i)),   # labels, lane-dense
            ],
            out_specs=pl.BlockSpec((1, tile_n), lambda i: (0, i)),
        ),
        compiler_params=pltpu.CompilerParams(
            # No cross-step state -> fully parallel grid (megacore-friendly on v7x).
            dimension_semantics=("parallel",),
        ),
        cost_estimate=pl.CostEstimate(
            flops=6 * n_pad * c,
            transcendentals=n_pad * c + n_pad,     # exp per element + log per row
            bytes_accessed=4 * (n_pad * c + 2 * n_pad),
        ),
    )(x_t, lbl)

    # Final tiny reduction in JAX: drop padded rows, (-t*logp).mean(0).sum() == sum/N.
    return jnp.sum(row_losses[0, :n]) / jnp.float32(n)


if __name__ == "__main__":
    key = jax.random.PRNGKey(0)
    k1, k2 = jax.random.split(key)

    N = 300  # deliberately not lane/tile aligned -> exercises the padded-tail path
    inputs = jax.random.normal(k1, (N, NUM_CLASSES), dtype=jnp.float32)
    targets = jax.random.randint(k2, (N,), 0, NUM_CLASSES, dtype=jnp.int32)

    # Small tile -> multi-step grid; also exercises padding.
    loss = cross_entropy_label_smooth(inputs, targets, tile_n=128)
    jax.block_until_ready(loss)

    # Pure-JAX reference mirroring the PyTorch forward.
    log_probs = jax.nn.log_softmax(inputs, axis=1)
    t = (1.0 - EPSILON) * jax.nn.one_hot(targets, NUM_CLASSES, dtype=jnp.float32) \
        + EPSILON / NUM_CLASSES
    ref = jnp.sum(jnp.mean(-t * log_probs, axis=0))
    assert jnp.allclose(loss, ref, atol=1e-5, rtol=1e-5), (loss, ref)

    # Also check the default large-tile path (single grid step here).
    loss2 = cross_entropy_label_smooth(inputs, targets)
    jax.block_until_ready(loss2)
    assert jnp.allclose(loss2, ref, atol=1e-5, rtol=1e-5), (loss2, ref)

    print("KERNEL_OK")
</pallas_src>

<mosaic_0001>
module attributes {stable_mosaic.version = 11 : i64} {
  func.func @_ce_label_smooth_kernel(%arg0: i32, %arg1: memref<7x128xf32, #tpu.memory_space<vmem>>, %arg2: memref<1x128xi32, #tpu.memory_space<vmem>>, %arg3: memref<1x128xf32, #tpu.memory_space<vmem>>) attributes {dimension_semantics = [#tpu.dimension_semantics<parallel>], iteration_bounds = array<i64: 3>, scalar_prefetch = 0 : i64, scratch_operands = 0 : i64, tpu.core_type = #tpu.core_type<tc>, window_params = [{transform_indices = @transform_0, window_bounds = array<i64: 7, 128>}, {transform_indices = @transform_1, window_bounds = array<i64: 1, 128>}, {transform_indices = @transform_2, window_bounds = array<i64: 1, 128>}]} {
    %c0 = arith.constant 0 : index
    %c0_0 = arith.constant 0 : index
    %0 = vector.load %arg1[%c0, %c0_0] : memref<7x128xf32, #tpu.memory_space<vmem>>, vector<7x128xf32>
    %c0_1 = arith.constant 0 : index
    %c0_2 = arith.constant 0 : index
    %1 = vector.load %arg2[%c0_1, %c0_2] : memref<1x128xi32, #tpu.memory_space<vmem>>, vector<1x128xi32>
    %cst = arith.constant dense<0xFF800000> : vector<128xf32>
    %2 = vector.multi_reduction <maximumf>, %0, %cst [0] : vector<7x128xf32> to vector<128xf32>
    %3 = vector.shape_cast %2 : vector<128xf32> to vector<1x128xf32>
    %4 = vector.broadcast %3 : vector<1x128xf32> to vector<7x128xf32>
    %5 = arith.subf %0, %4 : vector<7x128xf32>
    %6 = math.exp %5 : vector<7x128xf32>
    %cst_3 = arith.constant dense<0.000000e+00> : vector<128xf32>
    %7 = vector.multi_reduction <add>, %6, %cst_3 [0] : vector<7x128xf32> to vector<128xf32>
    %8 = vector.shape_cast %7 : vector<128xf32> to vector<1x128xf32>
    %9 = math.log %8 : vector<1x128xf32>
    %10 = arith.addf %3, %9 : vector<1x128xf32>
    %cst_4 = arith.constant dense<0.000000e+00> : vector<128xf32>
    %11 = vector.multi_reduction <add>, %0, %cst_4 [0] : vector<7x128xf32> to vector<128xf32>
    %12 = vector.shape_cast %11 : vector<128xf32> to vector<1x128xf32>
    %13 = tpu.iota {dimensions = array<i32: 0>} : vector<7x128xi32>
    %14 = vector.broadcast %1 : vector<1x128xi32> to vector<7x128xi32>
    %15 = arith.cmpi eq, %13, %14 : vector<7x128xi32>
    %cst_5 = arith.constant 0.000000e+00 : f32
    %16 = vector.broadcast %cst_5 : f32 to vector<7x128xf32>
    %17 = arith.select %15, %0, %16 : vector<7x128xi1>, vector<7x128xf32>
    %cst_6 = arith.constant dense<0.000000e+00> : vector<128xf32>
    %18 = vector.multi_reduction <add>, %17, %cst_6 [0] : vector<7x128xf32> to vector<128xf32>
    %19 = vector.shape_cast %18 : vector<128xf32> to vector<1x128xf32>
    %cst_7 = arith.constant 0.899999976 : f32
    %20 = vector.broadcast %cst_7 : f32 to vector<1x128xf32>
    %21 = arith.mulf %20, %19 : vector<1x128xf32>
    %22 = arith.subf %10, %21 : vector<1x128xf32>
    %cst_8 = arith.constant 0.0142857144 : f32
    %23 = vector.broadcast %cst_8 : f32 to vector<1x128xf32>
    %24 = arith.mulf %23, %12 : vector<1x128xf32>
    %25 = arith.subf %22, %24 : vector<1x128xf32>
    %c0_9 = arith.constant 0 : index
    %c0_10 = arith.constant 0 : index
    %26 = vector.load %arg3[%c0_9, %c0_10] : memref<1x128xf32, #tpu.memory_space<vmem>>, vector<1x128xf32>
    tpu.vector_store %arg3[%c0_9, %c0_10], %25 {strides = array<i32>} : memref<1x128xf32, #tpu.memory_space<vmem>>, vector<1x128xf32>,
    return
  }
  func.func @transform_0(%arg0: i32) -> (i32, i32) {
    %c0_i32 = arith.constant 0 : i32
    %c0_i32_0 = arith.constant 0 : i32
    return %c0_i32, %arg0 : i32, i32
  }
  func.func @transform_1(%arg0: i32) -> (i32, i32) {
    %c0_i32 = arith.constant 0 : i32
    %c0_i32_0 = arith.constant 0 : i32
    return %c0_i32, %arg0 : i32, i32
  }
  func.func @transform_2(%arg0: i32) -> (i32, i32) {
    %c0_i32 = arith.constant 0 : i32
    %c0_i32_0 = arith.constant 0 : i32
    return %c0_i32, %arg0 : i32, i32
  }
}

</mosaic_0001>

<llo_original>
// kernel: tpu_custom_call.1
$region0: #{tpu_custom_call.1}
  #allocation0 [shape = 'u32[]', space=smem, size = 0x4, offset = 0x4, fixed_abs, tag = 'smem constant byte address 0x4 - core index']
  #allocation1 [shape = 'u32[144,128]{1,0:T(1,128)}', space=vmem, size = 0x12000, scoped, tag = 'internal scratch']
  %s0 = inlined_call_operand.hbm [shape: f32[7,384], index: 0, kind: input, shape index: {}]
  %s1 = inlined_call_operand.hbm [shape: s32[1,384], index: 1, kind: input, shape index: {}]
  %s2 = inlined_call_operand.hbm [shape: f32[1,384], index: 2, kind: output, shape index: {}]
  %s3 = sld [smem:[#allocation0]]
  $region49: #{tpu_custom_call.1} parent=0
    _
  %s5 = ssub.s32 1, %s3
  %s6 = scalar_select 0, %s5, %s3
  $region1: #{tpu_custom_call.1} parent=0
    #allocation2 [shape = 'u8[8192]{0}', space=vmem, size = 0x2000, scoped, tag = 'input window, operand 0']
    #allocation3 [shape = 's32[2]{0}', space=sflag, size = 0x8, scoped, tag = 'scoped memory for tpu_custom_call.1']
    #allocation4 [shape = 's32[2]{0}', space=sflag, size = 0x8, scoped, tag = 'scoped memory for tpu_custom_call.1']
    #allocation5 [shape = 'u8[1024]{0}', space=vmem, size = 0x400, scoped, tag = 'input window, operand 1']
    #allocation6 [shape = 's32[2]{0}', space=sflag, size = 0x8, scoped, tag = 'scoped memory for tpu_custom_call.1']
    #allocation7 [shape = 'u8[1024]{0}', space=vmem, size = 0x400, scoped, tag = 'output window, operand 0']
    %7 = vsyncpa [#allocation3], 0
    %s8 = scalar_lea.sflag [#allocation3], 1
    %9 = vsyncpa %s8, 0
    %10 = vsyncpa [#allocation6], 0
    %s11 = scalar_lea.sflag [#allocation6], 1
    %12 = vsyncpa %s11, 0
    %13 = vsyncpa [#allocation4], 0
    %s14 = scalar_lea.sflag [#allocation4], 1
    %15 = vsyncpa %s14, 0
    loop: start=0, step=1, limit=5
    $region2: #{tpu_custom_call.1} parent=1 // loop_pre_header
      _
    $region3: #{tpu_custom_call.1} parent=1 // loop_header
      %s17 = sphi 0, %s21
      %p18 = scmp.ge.s32.totalorder %s17, 5
      %s27 = sphi 0, %s29
      %s30 = sphi 0, %s27
      %s31 = sphi 0, %s30
      %s47 = sphi 0, %s31
      %s53 = sphi 0, %s55
      %s56 = sphi 0, %s53
      %s57 = sphi 0, %s56
      %s73 = sphi 0, %s57
      %s79 = sphi 0, %s81
      %s82 = sphi 0, %s79
      %s83 = sphi 0, %s82
      %s99 = sphi 0, %s83
    $region4: #{tpu_custom_call.1} parent=1 // loop_header_branch
      %20 = sbr.rel (%p18) target = $region8
    $region5: #{tpu_custom_call.1} parent=1 // loop_body
      %s22 = ssub.s32 %s17, 1
      %s23 = ssub.s32 %s17, 2
      %s24 = sadd.s32 %s17, 1
      %s25 = ssub.s32 %s17, %s24
      %p26 = scmp.eq.s32.totalorder %s25, 0
      %s28 = sadd.s32 %s27, 1
      %s29 = scalar_select %p26, %s27, %s28
      %p32 = pneg %p26
      %p33 = scmp.eq.s32.totalorder %s17, 2
      %p34 = por %p32, %p33
      %p35 = scmp.ne.s32.totalorder %s27, %s30
      %p36 = scmp.eq.s32.totalorder %s17, 0
      %p37 = por %p35, %p36
      %p38 = scmp.ne.s32.totalorder %s27, %s30
      %p39 = scmp.eq.s32.totalorder %s22, 2
      %p40 = por %p38, %p39
      %p41 = scmp.ne.s32.totalorder %s30, %s31
      %p42 = scmp.eq.s32.totalorder %s22, 0
      %p43 = por %p41, %p42
      %p44 = scmp.ne.s32.totalorder %s30, %s31
      %p45 = scmp.eq.s32.totalorder %s23, 2
      %p46 = por %p44, %p45
      %p48 = scmp.ne.s32.totalorder %s31, %s47
      %p49 = scmp.eq.s32.totalorder %s23, 0
      %p50 = por %p48, %p49
      %s51 = ssub.s32 %s17, %s24
      %p52 = scmp.eq.s32.totalorder %s51, 0
      %s54 = sadd.s32 %s53, 1
      %s55 = scalar_select %p52, %s53, %s54
      %p58 = pneg %p52
      %p59 = scmp.eq.s32.totalorder %s17, 2
      %p60 = por %p58, %p59
      %p61 = scmp.ne.s32.totalorder %s53, %s56
      %p62 = scmp.eq.s32.totalorder %s17, 0
      %p63 = por %p61, %p62
      %p64 = scmp.ne.s32.totalorder %s53, %s56
      %p65 = scmp.eq.s32.totalorder %s22, 2
      %p66 = por %p64, %p65
      %p67 = scmp.ne.s32.totalorder %s56, %s57
      %p68 = scmp.eq.s32.totalorder %s22, 0
      %p69 = por %p67, %p68
      %p70 = scmp.ne.s32.totalorder %s56, %s57
      %p71 = scmp.eq.s32.totalorder %s23, 2
      %p72 = por %p70, %p71
      %p74 = scmp.ne.s32.totalorder %s57, %s73
      %p75 = scmp.eq.s32.totalorder %s23, 0
      %p76 = por %p74, %p75
      %s77 = ssub.s32 %s17, %s24
      %p78 = scmp.eq.s32.totalorder %s77, 0
      %s80 = sadd.s32 %s79, 1
      %s81 = scalar_select %p78, %s79, %s80
      %p84 = pneg %p78
      %p85 = scmp.eq.s32.totalorder %s17, 2
      %p86 = por %p84, %p85
      %p87 = scmp.ne.s32.totalorder %s79, %s82
      %p88 = scmp.eq.s32.totalorder %s17, 0
      %p89 = por %p87, %p88
      %p90 = scmp.ne.s32.totalorder %s79, %s82
      %p91 = scmp.eq.s32.totalorder %s22, 2
      %p92 = por %p90, %p91
      %p93 = scmp.ne.s32.totalorder %s82, %s83
      %p94 = scmp.eq.s32.totalorder %s22, 0
      %p95 = por %p93, %p94
      %p96 = scmp.ne.s32.totalorder %s82, %s83
      %p97 = scmp.eq.s32.totalorder %s23, 2
      %p98 = por %p96, %p97
      %p100 = scmp.ne.s32.totalorder %s83, %s99
      %p101 = scmp.eq.s32.totalorder %s23, 0
      %p102 = por %p100, %p101
      %p103 = scmp.le.s32.totalorder 1, %s17
      %p104 = scmp.lt.s32.totalorder %s17, 4
      %p105 = pnand %p103, %p104
      %p106 = pneg %p105
      // Predicated region
      $region9: #{tpu_custom_call.1} parent=5 // pred_check
        _
      $region10: #{tpu_custom_call.1} parent=5 // pred_check_branch
        %108 = sbr.rel (%p105) target = $region12
      $region11: #{tpu_custom_call.1} parent=5 // pred_region
        %s109 = ssub.s32 %s17, 1
      $region12: #{tpu_custom_call.1} parent=5 // pred_fallthru
        _
      %p110 = scmp.lt.s32.totalorder %s17, 3
      // Predicated region
      $region13: #{tpu_custom_call.1} parent=5 // pred_check
        %p111 = pneg %p110
      $region14: #{tpu_custom_call.1} parent=5 // pred_check_branch
        %113 = sbr.rel (%p111) target = $region16
      $region15: #{tpu_custom_call.1} parent=5 // pred_region
        // Predicated region
        $region17: #{tpu_custom_call.1} parent=15 // pred_check
          %p114 = pneg %p37
        $region18: #{tpu_custom_call.1} parent=15 // pred_check_branch
          %116 = sbr.rel (%p114) target = $region20
        $region19: #{tpu_custom_call.1} parent=15 // pred_region
          %s117 = sand.u32 %s27, 1
          %s118 = scalar_lea.sflag [#allocation3], %s117
          %s119 = sand.u32 %s27, 1
          %s120 = smul.addr %s119, 8
          %s121 = scalar_lea.vmem [#allocation2], %s120
          %s123 = ssub.s32 128, 128
          %124 = vsyncadd %s118, %s123
          %s125 = smul.addr %s17, 128
          %s126 = scalar_lea.hbm %s0, %s125
          %s128 = sshll.u32 %s121, 4
          %s129 = int_to_ptr.vmem [resolvable:$true] %s128
          %131 = dma.hbm_to_vmem [thread:$0]  %s126, 128, %s129, %s118
        $region20: #{tpu_custom_call.1} parent=15 // pred_fallthru
          _
        // Predicated region
        $region21: #{tpu_custom_call.1} parent=15 // pred_check
          %p132 = pneg %p63
        $region22: #{tpu_custom_call.1} parent=15 // pred_check_branch
          %134 = sbr.rel (%p132) target = $region24
        $region23: #{tpu_custom_call.1} parent=15 // pred_region
          %s135 = sand.u32 %s53, 1
          %s136 = scalar_lea.sflag [#allocation6], %s135
          %s137 = sand.u32 %s53, 1
          %s138 = scalar_lea.vmem [#allocation5], %s137
          %s140 = ssub.s32 16, 16
          %141 = vsyncadd %s136, %s140
          %s142 = smul.addr %s17, 16
          %s143 = scalar_lea.hbm %s1, %s142
          %s145 = sshll.u32 %s138, 4
          %s146 = int_to_ptr.vmem [resolvable:$true] %s145
          %148 = dma.hbm_to_vmem [thread:$0]  %s143, 16, %s146, %s136
        $region24: #{tpu_custom_call.1} parent=15 // pred_fallthru
          _
      $region16: #{tpu_custom_call.1} parent=5 // pred_fallthru
        _
      %p149 = scmp.le.s32.totalorder 1, %s17
      %p150 = scmp.lt.s32.totalorder %s17, 4
      %p151 = pnand %p149, %p150
      %p152 = pneg %p151
      // Predicated region
      $region25: #{tpu_custom_call.1} parent=5 // pred_check
        _
      $region26: #{tpu_custom_call.1} parent=5 // pred_check_branch
        %154 = sbr.rel (%p151) target = $region28
      $region27: #{tpu_custom_call.1} parent=5 // pred_region
        %s155 = ssub.s32 %s17, 1
        %s156 = sand.u32 %s30, 1
        %s157 = scalar_lea.sflag [#allocation3], %s156
        %s158 = sand.u32 %s30, 1
        %s159 = smul.addr %s158, 8
        %s160 = scalar_lea.vmem [#allocation2], %s159
        // Predicated region
        $region29: #{tpu_custom_call.1} parent=27 // pred_check
          %p161 = pneg %p43
        $region30: #{tpu_custom_call.1} parent=27 // pred_check_branch
          %163 = sbr.rel (%p161) target = $region32
        $region31: #{tpu_custom_call.1} parent=27 // pred_region
          %164 = dma.done %s157, 128
        $region32: #{tpu_custom_call.1} parent=27 // pred_fallthru
          _
        %s165 = sand.u32 %s56, 1
        %s166 = scalar_lea.sflag [#allocation6], %s165
        %s167 = sand.u32 %s56, 1
        %s168 = scalar_lea.vmem [#allocation5], %s167
        // Predicated region
        $region33: #{tpu_custom_call.1} parent=27 // pred_check
          %p169 = pneg %p69
        $region34: #{tpu_custom_call.1} parent=27 // pred_check_branch
          %171 = sbr.rel (%p169) target = $region36
        $region35: #{tpu_custom_call.1} parent=27 // pred_region
          %172 = dma.done %s166, 16
        $region36: #{tpu_custom_call.1} parent=27 // pred_fallthru
          _
        %s173 = sand.u32 %s30, 1
        %s174 = scalar_lea.sflag [#allocation3], %s173
        %s175 = sand.u32 %s30, 1
        %s176 = smul.addr %s175, 8
        %s177 = scalar_lea.vmem [#allocation2], %s176
        %p178 = pneg %p43
        %p179 = pneg %p40
        %s180 = sand.u32 %s56, 1
        %s181 = scalar_lea.sflag [#allocation6], %s180
        %s182 = sand.u32 %s56, 1
        %s183 = scalar_lea.vmem [#allocation5], %s182
        %p184 = pneg %p69
        %p185 = pneg %p66
        %p186 = pneg %p95
        %p187 = pneg %p92
        %s188 = sand.u32 %s82, 1
        %s189 = scalar_lea.sflag [#allocation4], %s188
        %s190 = sand.u32 %s82, 1
        %s191 = scalar_lea.vmem [#allocation7], %s190
        %v192 = vld [vmem:[%s160] sm:$0x7f]
        %v193 = vld [vmem:[%s168] sm:$0x1]
        %vm194 = vcmask 1046528
        %v195 = vsel %vm194, %v192, -inf
        %v196 = vrot.slane %v195, 4
        %v197 = vmax.f32 %v195, %v196
        %v198 = vrot.slane %v197, 2
        %v199 = vmax.f32 %v197, %v198
        %v200 = vrot.slane %v199, 1
        %v201 = vmax.f32 %v199, %v200
        %v202 = vsub.f32 %v192, %v201
        %v203 = vmul.f32 %v202, 1.442695
        %v204 = vpow.pop %v203
        %v205 = vsel %vm194, %v204, 0.0
        %v206 = vrot.slane %v205, 4
        %v207 = vadd.f32 %v205, %v206
        %v208 = vrot.slane %v207, 2
        %v209 = vadd.f32 %v207, %v208
        %v210 = vrot.slane %v209, 1
        %v211 = vadd.f32 %v209, %v210
        %v212 = vlog2.pop %v211
        %v213 = vmul.f32 %v212, 0.6931472
        %v214 = vadd.f32 %v201, %v213
        %v215 = vsel %vm194, %v192, 0.0
        %v216 = vrot.slane %v215, 4
        %v217 = vadd.f32 %v215, %v216
        %v218 = vrot.slane %v217, 2
        %v219 = vadd.f32 %v217, %v218
        %v220 = vrot.slane %v219, 1
        %v221 = vadd.f32 %v219, %v220
        %v222 = vlaneseq
        %v223 = vshrl.u32 %v222, 7
        %v224 = vlaneseq
        %v225 = vshrl.u32 %v224, 7
        %v226 = vsub.s32 0, %v225
        %v227 = vrot.slane %v193, %v226
        %vm228 = vcmp.eq.s32.totalorder %v223, %v227
        %v229 = vsel %vm228, %v192, 0.0
        %v230 = vsel %vm194, %v229, 0.0
        %v231 = vrot.slane %v230, 4
        %v232 = vadd.f32 %v230, %v231
        %v233 = vrot.slane %v232, 2
        %v234 = vadd.f32 %v232, %v233
        %v235 = vrot.slane %v234, 1
        %v236 = vadd.f32 %v234, %v235
        %v237 = vmul.f32 %v236, 0.9
        %v238 = vsub.f32 %v214, %v237
        %v239 = vmul.f32 %v221, 0.014285714
        %v240 = vsub.f32 %v238, %v239
        %241 = vst [vmem:[%s191] sm:$0x1] %v240
        %s242 = sand.u32 %s82, 1
        %s243 = scalar_lea.sflag [#allocation4], %s242
        %s244 = sand.u32 %s82, 1
        %s245 = scalar_lea.vmem [#allocation7], %s244
        // Predicated region
        $region37: #{tpu_custom_call.1} parent=27 // pred_check
          %p246 = pneg %p92
        $region38: #{tpu_custom_call.1} parent=27 // pred_check_branch
          %248 = sbr.rel (%p246) target = $region40
        $region39: #{tpu_custom_call.1} parent=27 // pred_region
          %s250 = ssub.s32 16, 16
          %251 = vsyncadd %s243, %s250
          %s252 = smul.addr %s22, 16
          %s253 = scalar_lea.hbm %s2, %s252
          %s255 = sshll.u32 %s245, 4
          %s256 = int_to_ptr.vmem [resolvable:$true] %s255
          %258 = dma.vmem_to_hbm [thread:$0]  %s256, 16, %s253, %s243
        $region40: #{tpu_custom_call.1} parent=27 // pred_fallthru
          _
      $region28: #{tpu_custom_call.1} parent=5 // pred_fallthru
        _
      %p259 = scmp.le.s32.totalorder 2, %s17
      // Predicated region
      $region41: #{tpu_custom_call.1} parent=5 // pred_check
        %p260 = pneg %p259
      $region42: #{tpu_custom_call.1} parent=5 // pred_check_branch
        %262 = sbr.rel (%p260) target = $region44
      $region43: #{tpu_custom_call.1} parent=5 // pred_region
        %s263 = ssub.s32 %s17, 2
        // Predicated region
        $region45: #{tpu_custom_call.1} parent=43 // pred_check
          %p264 = pneg %p98
        $region46: #{tpu_custom_call.1} parent=43 // pred_check_branch
          %266 = sbr.rel (%p264) target = $region48
        $region47: #{tpu_custom_call.1} parent=43 // pred_region
          %s267 = sand.u32 %s83, 1
          %s268 = scalar_lea.sflag [#allocation4], %s267
          %s269 = sand.u32 %s83, 1
          %s270 = scalar_lea.vmem [#allocation7], %s269
          %271 = dma.done %s268, 16
        $region48: #{tpu_custom_call.1} parent=43 // pred_fallthru
          _
      $region44: #{tpu_custom_call.1} parent=5 // pred_fallthru
        _
    $region6: #{tpu_custom_call.1} parent=1 // loop_footer
      %s21 = sadd.s32 1, %s17
    $region7: #{tpu_custom_call.1} parent=1 // loop_footer_branch
      %16 = sbr.rel target = $region3
    $region8: #{tpu_custom_call.1} parent=1 // loop_exit
      _
    %272 = vsyncpa [#allocation3], 1
    %s273 = scalar_lea.sflag [#allocation3], 1
    %274 = vsyncpa %s273, 1
    %275 = vsyncpa [#allocation6], 1
    %s276 = scalar_lea.sflag [#allocation6], 1
    %277 = vsyncpa %s276, 1
    %278 = vsyncpa [#allocation4], 1
    %s279 = scalar_lea.sflag [#allocation4], 1
    %280 = vsyncpa %s279, 1

</llo_original>
